<compile_context>
chip_gen: v6e
topology: v6e:2x2x1
jax: 0.10.0
libtpu: 0.0.40
codegen_flags: <defaults>
</compile_context>

<pallas_src>
import math
import jax
import jax.numpy as jnp
import numpy as np
from jax.experimental import pallas as pl
from jax.experimental.pallas import tpu as pltpu


def _build_pe_buffer(d_model: int, max_len: int = 5000, dtype=jnp.float32) -> jnp.ndarray:
    """Deterministic buffer construction, mirrors PositionalEncoding.__init__."""
    position = np.arange(0, max_len, dtype=np.float32)[:, None]                      # [max_len, 1]
    div_term = np.exp(np.arange(0, d_model, 2, dtype=np.float32)
                      * (-math.log(10000.0) / d_model))                               # [d_model/2]
    pe = np.zeros((max_len, d_model), dtype=np.float32)
    pe[:, 0::2] = np.sin(position * div_term)
    pe[:, 1::2] = np.cos(position * div_term)
    return jnp.asarray(pe, dtype=dtype)[None, :, :]                                   # [1, max_len, d_model]


def _add_pe_kernel(x_ref, pe_ref, o_ref):
    # x_ref / o_ref: (bt, ts, D) VMEM tiles; pe_ref: (1, ts, D) -> broadcast over batch rows.
    o_ref[...] = x_ref[...] + pe_ref[...]


def _sublane(itemsize: int) -> int:
    # Dtype-aware sublane multiple for the second-to-last block dim.
    return {4: 8, 2: 16, 1: 32}.get(itemsize, 8)


def _vmem_budget():
    """Returns (per-buffer tile budget, cap on total double-buffered footprint), generation aware."""
    cap = 24 << 20  # conservative fallback: safe under v7x's 64 MiB physical VMEM
    try:
        info = pltpu.get_tpu_info()
        phys = getattr(info, "vmem_capacity_bytes", None)
        if phys:
            # Keep the double-buffered working set under ~40% of physical VMEM:
            # ~51 MiB on v5e/v6e (128 MiB), ~25 MiB on v7x (64 MiB).
            cap = max(8 << 20, int(phys * 0.4))
    except Exception:
        pass
    # 6 tiles live at once (x, out, pe -> each double-buffered); x/out carry the bandwidth.
    budget = max(1 << 20, min(8 << 20, cap // 6))
    return budget, cap


def _choose_tiles(B: int, S: int, D: int, itemsize: int, buffer_budget: int, vmem_cap: int):
    """Pick (bt, ts) so one x tile is ~buffer_budget bytes and the total double-buffered
    VMEM footprint stays under vmem_cap. ts is a multiple of the dtype sublane count
    unless it equals the full sequence length (ragged last block handled via cdiv)."""
    sub = _sublane(itemsize)
    row_bytes = max(1, D * itemsize)

    def footprint(bt, ts):
        # 2 pipeline buffers of (x tile + out tile + pe tile)
        return 2 * (2 * bt * ts + ts) * row_bytes

    ts_max = max(sub, (buffer_budget // row_bytes) // sub * sub)
    ts = S if S <= ts_max else ts_max
    # Fold batch rows into the block so small-S workloads still move big slabs per step.
    bt = min(B, max(1, buffer_budget // (ts * row_bytes)))

    while bt > 1 and footprint(bt, ts) > vmem_cap:
        bt -= 1
    while ts > sub and footprint(bt, ts) > vmem_cap:
        ts = max(sub, ((ts - 1) // sub) * sub)
    return bt, ts, footprint(bt, ts)


def positional_encoding_forward(x: jnp.ndarray, pe_full: jnp.ndarray) -> jnp.ndarray:
    """x: [B, S, D]; pe_full: [1, max_len, D] with max_len >= S. Returns x + pe[:, :S, :].

    NOTE: x is aliased to the output (input_output_aliases={0: 0}); call through
    jax.jit(..., donate_argnums=(0,)) so the alias is real and x is treated as donated.
    """
    B, S, D = x.shape
    assert pe_full.shape[0] == 1 and pe_full.shape[2] == D and pe_full.shape[1] >= S

    pe_full = pe_full.astype(x.dtype)  # match dtypes: smaller pe DMA, no promotion hazard at the store
    itemsize = jnp.dtype(x.dtype).itemsize
    buffer_budget, vmem_cap = _vmem_budget()
    bt, ts, fp = _choose_tiles(B, S, D, itemsize, buffer_budget, vmem_cap)

    # Seq tiles outer, batch tiles inner -> pe block index constant across the inner axis.
    grid = (pl.cdiv(S, ts), pl.cdiv(B, bt))
    # Cover 3 arrays x 2 pipeline buffers x tile, plus headroom; always above v5e's 16 MiB default.
    vmem_limit = int(max(16 << 20, fp + fp // 4 + (2 << 20)))

    return pl.pallas_call(
        _add_pe_kernel,
        out_shape=jax.ShapeDtypeStruct((B, S, D), x.dtype),
        grid_spec=pltpu.PrefetchScalarGridSpec(
            num_scalar_prefetch=0,
            grid=grid,
            in_specs=[
                # x: (bt, ts, D) slab of batch tile b, sequence tile s.
                pl.BlockSpec((bt, ts, D), lambda s, b: (b, s, 0)),
                # pe: sliced straight out of the [1, max_len, D] buffer (no wrapper slice);
                # block index constant over the inner batch axis -> fetched once per seq tile.
                pl.BlockSpec((1, ts, D), lambda s, b: (0, s, 0)),
            ],
            out_specs=pl.BlockSpec((bt, ts, D), lambda s, b: (b, s, 0)),
        ),
        # x is dead after the add: alias it to the output (no second B*S*D HBM buffer).
        input_output_aliases={0: 0},
        compiler_params=pltpu.CompilerParams(
            dimension_semantics=("parallel", "parallel"),
            vmem_limit_bytes=vmem_limit,
        ),
    )(x, pe_full)


if __name__ == "__main__":
    # Small shapes consistent with the module's forward: [batch, seq_len, d_model].
    # d_model = 128 keeps the output last dim lane-dense (unmasked vector stores).
    B, S, D = 2, 8, 128
    MAX_LEN = 64  # small deterministic max_len for the synthetic buffer

    key = jax.random.PRNGKey(0)
    x = jax.random.normal(key, (B, S, D), dtype=jnp.float32)
    pe_full = _build_pe_buffer(D, MAX_LEN, dtype=x.dtype)

    # Pure-JAX reference computed BEFORE the kernel call (x is donated / aliased into the output).
    ref = np.asarray(x + pe_full[:, :S, :])

    fwd = jax.jit(positional_encoding_forward, donate_argnums=(0,))
    out = jax.block_until_ready(fwd(x, pe_full))

    np.testing.assert_allclose(np.asarray(out), ref, rtol=1e-6, atol=1e-6)
    print("KERNEL_OK")
</pallas_src>

<mosaic_0001>
module attributes {stable_mosaic.version = 11 : i64} {
  func.func @_add_pe_kernel(%arg0: i32, %arg1: i32, %arg2: memref<2x8x128xf32, #tpu.memory_space<vmem>>, %arg3: memref<1x8x128xf32, #tpu.memory_space<vmem>>, %arg4: memref<2x8x128xf32, #tpu.memory_space<vmem>>) attributes {dimension_semantics = [#tpu.dimension_semantics<parallel>, #tpu.dimension_semantics<parallel>], iteration_bounds = array<i64: 1, 1>, scalar_prefetch = 0 : i64, scratch_operands = 0 : i64, tpu.core_type = #tpu.core_type<tc>, window_params = [{transform_indices = @transform_0, window_bounds = array<i64: 2, 8, 128>}, {transform_indices = @transform_1, window_bounds = array<i64: 1, 8, 128>}, {transform_indices = @transform_2, window_bounds = array<i64: 2, 8, 128>}]} {
    %c0 = arith.constant 0 : index
    %c0_0 = arith.constant 0 : index
    %c0_1 = arith.constant 0 : index
    %0 = vector.load %arg2[%c0, %c0_0, %c0_1] : memref<2x8x128xf32, #tpu.memory_space<vmem>>, vector<2x8x128xf32>
    %c0_2 = arith.constant 0 : index
    %c0_3 = arith.constant 0 : index
    %c0_4 = arith.constant 0 : index
    %1 = vector.load %arg3[%c0_2, %c0_3, %c0_4] : memref<1x8x128xf32, #tpu.memory_space<vmem>>, vector<1x8x128xf32>
    %2 = vector.broadcast %1 : vector<1x8x128xf32> to vector<2x8x128xf32>
    %3 = arith.addf %0, %2 : vector<2x8x128xf32>
    %c0_5 = arith.constant 0 : index
    %c0_6 = arith.constant 0 : index
    %c0_7 = arith.constant 0 : index
    %4 = vector.load %arg4[%c0_5, %c0_6, %c0_7] : memref<2x8x128xf32, #tpu.memory_space<vmem>>, vector<2x8x128xf32>
    tpu.vector_store %arg4[%c0_5, %c0_6, %c0_7], %3 {strides = array<i32>} : memref<2x8x128xf32, #tpu.memory_space<vmem>>, vector<2x8x128xf32>,
    return
  }
  func.func @transform_0(%arg0: i32, %arg1: i32) -> (i32, i32, i32) {
    %c0_i32 = arith.constant 0 : i32
    %c0_i32_0 = arith.constant 0 : i32
    return %arg1, %arg0, %c0_i32 : i32, i32, i32
  }
  func.func @transform_1(%arg0: i32, %arg1: i32) -> (i32, i32, i32) {
    %c0_i32 = arith.constant 0 : i32
    %c0_i32_0 = arith.constant 0 : i32
    %c0_i32_1 = arith.constant 0 : i32
    return %c0_i32, %arg0, %c0_i32_0 : i32, i32, i32
  }
  func.func @transform_2(%arg0: i32, %arg1: i32) -> (i32, i32, i32) {
    %c0_i32 = arith.constant 0 : i32
    %c0_i32_0 = arith.constant 0 : i32
    return %arg1, %arg0, %c0_i32 : i32, i32, i32
  }
}

</mosaic_0001>

<llo_original>
// kernel: positional_encoding_forward.1
$region0: #{positional_encoding_forward.1}
  #allocation0 [shape = 'u32[]', space=smem, size = 0x4, offset = 0x4, fixed_abs, tag = 'smem constant byte address 0x4 - core index']
  #allocation1 [shape = 'u32[144,128]{1,0:T(1,128)}', space=vmem, size = 0x12000, scoped, tag = 'internal scratch']
  %s0 = inlined_call_operand.hbm [shape: f32[2,8,128], index: 0, kind: input, shape index: {}, may-alias: {0,2}]
  %s1 = inlined_call_operand.hbm [shape: f32[1,64,128], index: 1, kind: input, shape index: {}]
  %s2 = inlined_call_operand.hbm [shape: f32[2,8,128], index: 2, kind: output, shape index: {}, may-alias: {0,2}]
  %s3 = sld [smem:[#allocation0]]
  $region26: #{positional_encoding_forward.1} parent=0
    _
  %s5 = ssub.s32 1, %s3
  %s6 = scalar_select 0, %s5, %s3
  $region1: #{positional_encoding_forward.1} parent=0
    #allocation2 [shape = 'u8[8192]{0}', space=vmem, size = 0x2000, scoped, tag = 'input window, operand 0, single buffered']
    #allocation3 [shape = 's32[1]{0}', space=sflag, size = 0x4, scoped, tag = 'scoped memory for positional_encoding_forward.1']
    #allocation4 [shape = 's32[1]{0}', space=sflag, size = 0x4, scoped, tag = 'scoped memory for positional_encoding_forward.1']
    #allocation5 [shape = 'u8[4096]{0}', space=vmem, size = 0x1000, scoped, tag = 'input window, operand 1, single buffered']
    #allocation6 [shape = 's32[1]{0}', space=sflag, size = 0x4, scoped, tag = 'scoped memory for positional_encoding_forward.1']
    #allocation7 [shape = 'u8[8192]{0}', space=vmem, size = 0x2000, scoped, tag = 'output window, operand 0, single buffered']
    %7 = vsyncpa [#allocation3], 0
    %8 = vsyncpa [#allocation6], 0
    %9 = vsyncpa [#allocation4], 0
    // Predicated region
    $region2: #{positional_encoding_forward.1} parent=1 // pred_check
      _
    $region3: #{positional_encoding_forward.1} parent=1 // pred_check_branch
      %11 = sbr.rel (0) target = $region5
    $region4: #{positional_encoding_forward.1} parent=1 // pred_region
      %s13 = ssub.s32 256, 256
      %14 = vsyncadd [#allocation3], %s13
      %s15 = sshll.u32 [#allocation2], 4
      %s16 = int_to_ptr.vmem [resolvable:$true] %s15
      %21 = dma.hbm_to_vmem [thread:$0]  %s0, 256, %s16, [#allocation3], 128, 128, 8
    $region5: #{positional_encoding_forward.1} parent=1 // pred_fallthru
      _
    // Predicated region
    $region6: #{positional_encoding_forward.1} parent=1 // pred_check
      _
    $region7: #{positional_encoding_forward.1} parent=1 // pred_check_branch
      %23 = sbr.rel (0) target = $region9
    $region8: #{positional_encoding_forward.1} parent=1 // pred_region
      %s25 = ssub.s32 128, 128
      %26 = vsyncadd [#allocation6], %s25
      %s28 = sshll.u32 [#allocation5], 4
      %s29 = int_to_ptr.vmem [resolvable:$true] %s28
      %31 = dma.hbm_to_vmem [thread:$0]  %s1, 128, %s29, [#allocation6]
    $region9: #{positional_encoding_forward.1} parent=1 // pred_fallthru
      _
    // Predicated region
    $region10: #{positional_encoding_forward.1} parent=1 // pred_check
      _
    $region11: #{positional_encoding_forward.1} parent=1 // pred_check_branch
      %33 = sbr.rel (0) target = $region13
    $region12: #{positional_encoding_forward.1} parent=1 // pred_region
      %34 = dma.done [#allocation3], 256
    $region13: #{positional_encoding_forward.1} parent=1 // pred_fallthru
      _
    // Predicated region
    $region14: #{positional_encoding_forward.1} parent=1 // pred_check
      _
    $region15: #{positional_encoding_forward.1} parent=1 // pred_check_branch
      %36 = sbr.rel (0) target = $region17
    $region16: #{positional_encoding_forward.1} parent=1 // pred_region
      %37 = dma.done [#allocation6], 128
    $region17: #{positional_encoding_forward.1} parent=1 // pred_fallthru
      _
    %v38 = vld [vmem:[#allocation2] sm:$0xff]
    %v39 = vld [vmem:[#allocation2 + $0x8] sm:$0xff]
    %v40 = vld [vmem:[#allocation5] sm:$0xff]
    %v41 = vadd.f32 %v38, %v40
    %v42 = vadd.f32 %v39, %v40
    %43 = vst [vmem:[#allocation7] sm:$0xff] %v41
    %44 = vst [vmem:[#allocation7 + $0x8] sm:$0xff] %v42
    // Predicated region
    $region18: #{positional_encoding_forward.1} parent=1 // pred_check
      _
    $region19: #{positional_encoding_forward.1} parent=1 // pred_check_branch
      %46 = sbr.rel (0) target = $region21
    $region20: #{positional_encoding_forward.1} parent=1 // pred_region
      %s48 = ssub.s32 256, 256
      %49 = vsyncadd [#allocation4], %s48
      %s50 = sshll.u32 [#allocation7], 4
      %s51 = int_to_ptr.vmem [resolvable:$true] %s50
      %56 = dma.vmem_to_hbm [thread:$0]  %s51, 256, %s2, [#allocation4], 128, 128, 8
    $region21: #{positional_encoding_forward.1} parent=1 // pred_fallthru
      _
    // Predicated region
    $region22: #{positional_encoding_forward.1} parent=1 // pred_check
      _
    $region23: #{positional_encoding_forward.1} parent=1 // pred_check_branch
      %58 = sbr.rel (0) target = $region25
    $region24: #{positional_encoding_forward.1} parent=1 // pred_region
      %59 = dma.done [#allocation4], 256
    $region25: #{positional_encoding_forward.1} parent=1 // pred_fallthru
      _
    %60 = vsyncpa [#allocation3], 1
    %61 = vsyncpa [#allocation6], 1
    %62 = vsyncpa [#allocation4], 1

</llo_original>
